<compile_context>
chip_gen: v5e
topology: v5e:2x2
jax: 0.10.0
libtpu: 0.0.40
codegen_flags: <defaults>
</compile_context>

<pallas_src>
import jax
import jax.numpy as jnp
from jax.experimental import pallas as pl
from jax.experimental.pallas import tpu as pltpu

_LANE = 128


def _cdiv(a, b):
    return -(-a // b)


def _round_up(a, m):
    return _cdiv(a, m) * m


def policy_kernel(x_ref, u_ref, w1_ref, b1_ref, w2_ref, b2_ref, w3_ref, b3_ref,
                  out_ref):
    # fc1 + ReLU : [TB,128]bf16 @ [128,128pad]bf16 -> f32
    x = x_ref[...].astype(jnp.bfloat16)
    h1 = jnp.dot(x, w1_ref[...], preferred_element_type=jnp.float32)
    h1 = jnp.maximum(h1 + b1_ref[...], 0.0)

    # fc2 + ReLU : [TB,128pad] @ [128pad,128pad]
    h2 = jnp.dot(h1.astype(jnp.bfloat16), w2_ref[...],
                 preferred_element_type=jnp.float32)
    h2 = jnp.maximum(h2 + b2_ref[...], 0.0)

    # fc3 : [TB,128pad] @ [128pad,action_dim]
    scores = jnp.dot(h2.astype(jnp.bfloat16), w3_ref[...],
                     preferred_element_type=jnp.float32)
    scores = scores + b3_ref[...]

    # numerically stable, exact softmax over the (tiny) action axis
    m = jnp.max(scores, axis=-1, keepdims=True)
    e = jnp.exp(scores - m)
    probs = e / jnp.sum(e, axis=-1, keepdims=True)

    # fused categorical sampling (inverse-CDF): action = #{cum probs <= u}
    u = u_ref[...]                                   # [TB, 1] uniforms
    n_act = probs.shape[-1]
    cum = jnp.zeros_like(u)
    action = jnp.zeros_like(u)
    for j in range(n_act - 1):                       # unrolled (n_act = 2)
        cum = cum + probs[:, j:j + 1]
        action = action + (u >= cum).astype(jnp.float32)

    # packed output: [p_0, ..., p_{A-1}, action] -> one DMA per grid step
    out_ref[...] = jnp.concatenate([probs, action], axis=-1)


def init_params(key, state_dim=128, hidden=10, action_dim=2):
    """Deterministic torch-like init. Weights stored as [in, out]."""
    ks = jax.random.split(key, 6)

    def uniform(k, shape, fan_in):
        bound = 1.0 / jnp.sqrt(fan_in)
        return jax.random.uniform(k, shape, jnp.float32, -bound, bound)

    w1 = uniform(ks[0], (state_dim, hidden), state_dim)
    b1 = uniform(ks[1], (1, hidden), state_dim)
    w2 = uniform(ks[2], (hidden, hidden), hidden)
    b2 = uniform(ks[3], (hidden, hidden), hidden)[:1] * 0 + uniform(ks[3], (1, hidden), hidden)
    w3 = uniform(ks[4], (hidden, action_dim), hidden)
    b3 = uniform(ks[5], (1, action_dim), hidden)
    return (w1, b1, w2, b2, w3, b3)


def pad_params(params, lane=_LANE):
    """Zero-pad the hidden dim to a lane-friendly width and store the weight
    matrices in bf16 (MXU-native). Math is unchanged: padded hidden columns
    stay exactly 0 through ReLU, padded w2/w3 rows are 0."""
    w1, b1, w2, b2, w3, b3 = params
    hidden = w1.shape[1]
    hd_p = _round_up(hidden, lane)
    pc = hd_p - hidden

    w1p = jnp.pad(w1, ((0, 0), (0, pc))).astype(jnp.bfloat16)
    b1p = jnp.pad(b1, ((0, 0), (0, pc)))                       # f32
    w2p = jnp.pad(w2, ((0, pc), (0, pc))).astype(jnp.bfloat16)
    b2p = jnp.pad(b2, ((0, 0), (0, pc)))                       # f32
    w3p = jnp.pad(w3, ((0, pc), (0, 0))).astype(jnp.bfloat16)
    return (w1p, b1p, w2p, b2p, w3p, b3)


def policy_network_forward(x, padded_params, sample_key=None, get_action=True,
                           *, block_rows=1024):
    """x: [batch, state_dim] f32.  Returns probs [batch, action_dim] f32 (and
    sampled actions [batch, 1] uint8 when get_action=True)."""
    w1, b1, w2, b2, w3, b3 = padded_params
    batch, state_dim = x.shape
    assert state_dim == w1.shape[0]
    hid_pad = w1.shape[1]
    action_dim = w3.shape[1]

    # Host-side uniforms drive the in-kernel inverse-CDF sample (replaces the
    # torch module's host np.multinomial loop).
    if get_action:
        if sample_key is None:
            sample_key = jax.random.PRNGKey(0)
        u = jax.random.uniform(sample_key, (batch, 1), jnp.float32)
    else:
        u = jnp.zeros((batch, 1), jnp.float32)

    # Tile selection: balanced 2-way split for small/mid batches (keeps both
    # v7x TensorCores busy), block_rows tiles for large batches.  No batch
    # padding — the last block may be ragged; Pallas masks its writes.
    if batch <= 2 * block_rows:
        tb = max(8, _round_up(_cdiv(batch, 2), 8))
    else:
        tb = block_rows
    n_tiles = _cdiv(batch, tb)

    out = pl.pallas_call(
        policy_kernel,
        out_shape=jax.ShapeDtypeStruct((batch, action_dim + 1), jnp.float32),
        grid=(n_tiles,),
        in_specs=[
            pl.BlockSpec((tb, state_dim), lambda i: (i, 0)),        # x (tiled)
            pl.BlockSpec((tb, 1), lambda i: (i, 0)),                # u (tiled)
            pl.BlockSpec((state_dim, hid_pad), lambda i: (0, 0)),   # w1 resident
            pl.BlockSpec((1, hid_pad), lambda i: (0, 0)),           # b1
            pl.BlockSpec((hid_pad, hid_pad), lambda i: (0, 0)),     # w2
            pl.BlockSpec((1, hid_pad), lambda i: (0, 0)),           # b2
            pl.BlockSpec((hid_pad, action_dim), lambda i: (0, 0)),  # w3
            pl.BlockSpec((1, action_dim), lambda i: (0, 0)),        # b3
        ],
        out_specs=pl.BlockSpec((tb, action_dim + 1), lambda i: (i, 0)),
        compiler_params=pltpu.CompilerParams(
            dimension_semantics=("parallel",)),   # v7x: shard batch over 2 TCs
    )(x, u, w1, b1, w2, b2, w3, b3)

    probs = out[:, :action_dim]
    if not get_action:
        return probs
    actions = out[:, action_dim:].astype(jnp.uint8)   # match torch uint8 actions
    return probs, actions


def _reference_forward(x, params):
    """Pure-JAX f32 reference (unpadded params) for correctness check."""
    w1, b1, w2, b2, w3, b3 = params
    h1 = jnp.maximum(x @ w1 + b1, 0.0)
    h2 = jnp.maximum(h1 @ w2 + b2, 0.0)
    s = h2 @ w3 + b3
    return jax.nn.softmax(s, axis=1)


if __name__ == "__main__":
    key = jax.random.PRNGKey(0)
    k_p, k_x, k_u, k_x2 = jax.random.split(key, 4)

    state_dim, hidden, action_dim = 128, 10, 2
    params = init_params(k_p, state_dim=state_dim, hidden=hidden,
                         action_dim=action_dim)
    padded = pad_params(params)

    # --- small batch (RL-stepping / latency regime) -------------------------
    batch = 4
    x = jax.random.normal(k_x, (batch, state_dim), jnp.float32)
    probs, actions = policy_network_forward(x, padded, sample_key=k_u,
                                            get_action=True)
    probs, actions = jax.block_until_ready((probs, actions))

    ref = _reference_forward(x, params)
    assert probs.shape == (batch, action_dim)
    assert actions.shape == (batch, 1) and actions.dtype == jnp.uint8
    assert bool(jnp.all((actions >= 0) & (actions < action_dim)))
    # bf16 matmuls -> compare against the f32 reference with a loose tolerance
    assert bool(jnp.allclose(probs, ref, atol=2e-2, rtol=2e-2))
    assert bool(jnp.allclose(jnp.sum(probs, axis=1), 1.0, atol=1e-5))

    # --- larger, non-tile-multiple batch: 2 balanced tiles + ragged edge ----
    batch2 = 300
    x2 = jax.random.normal(k_x2, (batch2, state_dim), jnp.float32)
    probs2 = policy_network_forward(x2, padded, get_action=False)
    probs2 = jax.block_until_ready(probs2)
    ref2 = _reference_forward(x2, params)
    assert probs2.shape == (batch2, action_dim)
    assert bool(jnp.allclose(probs2, ref2, atol=2e-2, rtol=2e-2))
    assert bool(jnp.allclose(jnp.sum(probs2, axis=1), 1.0, atol=1e-5))

    print("KERNEL_OK")
</pallas_src>

<mosaic_0001>
module attributes {stable_mosaic.version = 11 : i64} {
  func.func @policy_kernel(%arg0: i32, %arg1: memref<8x128xf32, #tpu.memory_space<vmem>>, %arg2: memref<8x1xf32, #tpu.memory_space<vmem>>, %arg3: memref<128x128xbf16, #tpu.memory_space<vmem>>, %arg4: memref<1x128xf32, #tpu.memory_space<vmem>>, %arg5: memref<128x128xbf16, #tpu.memory_space<vmem>>, %arg6: memref<1x128xf32, #tpu.memory_space<vmem>>, %arg7: memref<128x2xbf16, #tpu.memory_space<vmem>>, %arg8: memref<1x2xf32, #tpu.memory_space<vmem>>, %arg9: memref<8x3xf32, #tpu.memory_space<vmem>>) attributes {dimension_semantics = [#tpu.dimension_semantics<parallel>], iteration_bounds = array<i64: 1>, scalar_prefetch = 0 : i64, scratch_operands = 0 : i64, tpu.core_type = #tpu.core_type<tc>, window_params = [{transform_indices = @transform_0, window_bounds = array<i64: 8, 128>}, {transform_indices = @transform_1, window_bounds = array<i64: 8, 1>}, {pipeline_mode = #tpu.pipeline_mode<synchronous>, transform_indices = @transform_2, window_bounds = array<i64: 128, 128>}, {pipeline_mode = #tpu.pipeline_mode<synchronous>, transform_indices = @transform_3, window_bounds = array<i64: 1, 128>}, {pipeline_mode = #tpu.pipeline_mode<synchronous>, transform_indices = @transform_4, window_bounds = array<i64: 128, 128>}, {pipeline_mode = #tpu.pipeline_mode<synchronous>, transform_indices = @transform_5, window_bounds = array<i64: 1, 128>}, {pipeline_mode = #tpu.pipeline_mode<synchronous>, transform_indices = @transform_6, window_bounds = array<i64: 128, 2>}, {pipeline_mode = #tpu.pipeline_mode<synchronous>, transform_indices = @transform_7, window_bounds = array<i64: 1, 2>}, {transform_indices = @transform_8, window_bounds = array<i64: 8, 3>}]} {
    %c0 = arith.constant 0 : index
    %c0_0 = arith.constant 0 : index
    %0 = vector.load %arg1[%c0, %c0_0] : memref<8x128xf32, #tpu.memory_space<vmem>>, vector<8x128xf32>
    %1 = arith.truncf %0 : vector<8x128xf32> to vector<8x128xbf16>
    %c0_1 = arith.constant 0 : index
    %c0_2 = arith.constant 0 : index
    %2 = vector.load %arg3[%c0_1, %c0_2] : memref<128x128xbf16, #tpu.memory_space<vmem>>, vector<128x128xbf16>
    %cst = arith.constant dense<0.000000e+00> : vector<8x128xf32>
    %3 = tpu.matmul %1, %2, %cst {dimension_numbers = #tpu.dot_dimension_numbers<[1], [0], [0], [1], [0, 0, 1, 1], [], []>} : vector<8x128xbf16>, vector<128x128xbf16>, vector<8x128xf32> -> vector<8x128xf32>
    %c0_3 = arith.constant 0 : index
    %c0_4 = arith.constant 0 : index
    %4 = vector.load %arg4[%c0_3, %c0_4] : memref<1x128xf32, #tpu.memory_space<vmem>>, vector<1x128xf32>
    %5 = vector.broadcast %4 : vector<1x128xf32> to vector<8x128xf32>
    %6 = arith.addf %3, %5 : vector<8x128xf32>
    %cst_5 = arith.constant 0.000000e+00 : f32
    %7 = vector.broadcast %cst_5 : f32 to vector<8x128xf32>
    %8 = arith.maximumf %6, %7 : vector<8x128xf32>
    %9 = arith.truncf %8 : vector<8x128xf32> to vector<8x128xbf16>
    %c0_6 = arith.constant 0 : index
    %c0_7 = arith.constant 0 : index
    %10 = vector.load %arg5[%c0_6, %c0_7] : memref<128x128xbf16, #tpu.memory_space<vmem>>, vector<128x128xbf16>
    %cst_8 = arith.constant dense<0.000000e+00> : vector<8x128xf32>
    %11 = tpu.matmul %9, %10, %cst_8 {dimension_numbers = #tpu.dot_dimension_numbers<[1], [0], [0], [1], [0, 0, 1, 1], [], []>} : vector<8x128xbf16>, vector<128x128xbf16>, vector<8x128xf32> -> vector<8x128xf32>
    %c0_9 = arith.constant 0 : index
    %c0_10 = arith.constant 0 : index
    %12 = vector.load %arg6[%c0_9, %c0_10] : memref<1x128xf32, #tpu.memory_space<vmem>>, vector<1x128xf32>
    %13 = vector.broadcast %12 : vector<1x128xf32> to vector<8x128xf32>
    %14 = arith.addf %11, %13 : vector<8x128xf32>
    %cst_11 = arith.constant 0.000000e+00 : f32
    %15 = vector.broadcast %cst_11 : f32 to vector<8x128xf32>
    %16 = arith.maximumf %14, %15 : vector<8x128xf32>
    %17 = arith.truncf %16 : vector<8x128xf32> to vector<8x128xbf16>
    %c0_12 = arith.constant 0 : index
    %c0_13 = arith.constant 0 : index
    %18 = vector.load %arg7[%c0_12, %c0_13] : memref<128x2xbf16, #tpu.memory_space<vmem>>, vector<128x2xbf16>
    %cst_14 = arith.constant dense<0.000000e+00> : vector<8x2xf32>
    %19 = tpu.matmul %17, %18, %cst_14 {dimension_numbers = #tpu.dot_dimension_numbers<[1], [0], [0], [1], [0, 0, 1, 1], [], []>} : vector<8x128xbf16>, vector<128x2xbf16>, vector<8x2xf32> -> vector<8x2xf32>
    %c0_15 = arith.constant 0 : index
    %c0_16 = arith.constant 0 : index
    %20 = vector.load %arg8[%c0_15, %c0_16] : memref<1x2xf32, #tpu.memory_space<vmem>>, vector<1x2xf32>
    %21 = vector.broadcast %20 : vector<1x2xf32> to vector<8x2xf32>
    %22 = arith.addf %19, %21 : vector<8x2xf32>
    %cst_17 = arith.constant dense<0xFF800000> : vector<8xf32>
    %23 = vector.multi_reduction <maximumf>, %22, %cst_17 [1] : vector<8x2xf32> to vector<8xf32>
    %24 = vector.shape_cast %23 : vector<8xf32> to vector<8x1xf32>
    %25 = vector.broadcast %24 : vector<8x1xf32> to vector<8x2xf32>
    %26 = arith.subf %22, %25 : vector<8x2xf32>
    %27 = math.exp %26 : vector<8x2xf32>
    %cst_18 = arith.constant dense<0.000000e+00> : vector<8xf32>
    %28 = vector.multi_reduction <add>, %27, %cst_18 [1] : vector<8x2xf32> to vector<8xf32>
    %29 = vector.shape_cast %28 : vector<8xf32> to vector<8x1xf32>
    %30 = vector.broadcast %29 : vector<8x1xf32> to vector<8x2xf32>
    %31 = arith.divf %27, %30 : vector<8x2xf32>
    %c0_19 = arith.constant 0 : index
    %c0_20 = arith.constant 0 : index
    %32 = vector.load %arg2[%c0_19, %c0_20] : memref<8x1xf32, #tpu.memory_space<vmem>>, vector<8x1xf32>
    %cst_21 = arith.constant 0.000000e+00 : f32
    %33 = vector.broadcast %cst_21 : f32 to vector<8x1xf32>
    %cst_22 = arith.constant 0.000000e+00 : f32
    %34 = vector.broadcast %cst_22 : f32 to vector<8x1xf32>
    %35 = vector.extract_strided_slice %31 {offsets = [0, 0], sizes = [8, 1], strides = [1, 1]} : vector<8x2xf32> to vector<8x1xf32>
    %36 = arith.addf %33, %35 : vector<8x1xf32>
    %37 = arith.cmpf oge, %32, %36 : vector<8x1xf32>
    %38 = arith.extui %37 : vector<8x1xi1> to vector<8x1xi32>
    %39 = arith.sitofp %38 : vector<8x1xi32> to vector<8x1xf32>
    %40 = arith.addf %34, %39 : vector<8x1xf32>
    %41 = tpu.concatenate %31, %40 in 1 : vector<8x2xf32>, vector<8x1xf32> -> vector<8x3xf32>
    %c0_23 = arith.constant 0 : index
    %c0_24 = arith.constant 0 : index
    %42 = vector.load %arg9[%c0_23, %c0_24] : memref<8x3xf32, #tpu.memory_space<vmem>>, vector<8x3xf32>
    tpu.vector_store %arg9[%c0_23, %c0_24], %41 {strides = array<i32>} : memref<8x3xf32, #tpu.memory_space<vmem>>, vector<8x3xf32>,
    return
  }
  func.func @transform_0(%arg0: i32) -> (i32, i32) {
    %c0_i32 = arith.constant 0 : i32
    %c0_i32_0 = arith.constant 0 : i32
    return %arg0, %c0_i32 : i32, i32
  }
  func.func @transform_1(%arg0: i32) -> (i32, i32) {
    %c0_i32 = arith.constant 0 : i32
    %c0_i32_0 = arith.constant 0 : i32
    return %arg0, %c0_i32 : i32, i32
  }
  func.func @transform_2(%arg0: i32) -> (i32, i32) {
    %c0_i32 = arith.constant 0 : i32
    %c0_i32_0 = arith.constant 0 : i32
    %c0_i32_1 = arith.constant 0 : i32
    return %c0_i32, %c0_i32_0 : i32, i32
  }
  func.func @transform_3(%arg0: i32) -> (i32, i32) {
    %c0_i32 = arith.constant 0 : i32
    %c0_i32_0 = arith.constant 0 : i32
    %c0_i32_1 = arith.constant 0 : i32
    return %c0_i32, %c0_i32_0 : i32, i32
  }
  func.func @transform_4(%arg0: i32) -> (i32, i32) {
    %c0_i32 = arith.constant 0 : i32
    %c0_i32_0 = arith.constant 0 : i32
    %c0_i32_1 = arith.constant 0 : i32
    return %c0_i32, %c0_i32_0 : i32, i32
  }
  func.func @transform_5(%arg0: i32) -> (i32, i32) {
    %c0_i32 = arith.constant 0 : i32
    %c0_i32_0 = arith.constant 0 : i32
    %c0_i32_1 = arith.constant 0 : i32
    return %c0_i32, %c0_i32_0 : i32, i32
  }
  func.func @transform_6(%arg0: i32) -> (i32, i32) {
    %c0_i32 = arith.constant 0 : i32
    %c0_i32_0 = arith.constant 0 : i32
    %c0_i32_1 = arith.constant 0 : i32
    return %c0_i32, %c0_i32_0 : i32, i32
  }
  func.func @transform_7(%arg0: i32) -> (i32, i32) {
    %c0_i32 = arith.constant 0 : i32
    %c0_i32_0 = arith.constant 0 : i32
    %c0_i32_1 = arith.constant 0 : i32
    return %c0_i32, %c0_i32_0 : i32, i32
  }
  func.func @transform_8(%arg0: i32) -> (i32, i32) {
    %c0_i32 = arith.constant 0 : i32
    %c0_i32_0 = arith.constant 0 : i32
    return %arg0, %c0_i32 : i32, i32
  }
}

</mosaic_0001>

<llo_original>
// kernel: tpu_custom_call.1
$region0: #{tpu_custom_call.1}
  #allocation0 [shape = 'u32[]', space=smem, size = 0x4, offset = 0x4, fixed_abs, tag = 'smem constant byte address 0x4 - core index']
  #allocation1 [shape = 'u32[72,128]{1,0:T(1,128)}', space=vmem, size = 0x9000, scoped, tag = 'internal scratch']
  %s0 = inlined_call_operand.vmem [shape: f32[4,128], index: 0, kind: input, shape index: {}]
  %s1 = inlined_call_operand.vmem [shape: f32[4,1], index: 1, kind: input, shape index: {}]
  %s2 = inlined_call_operand.vmem [shape: bf16[128,128], index: 2, kind: input, shape index: {}]
  %s3 = inlined_call_operand.vmem [shape: f32[1,128], index: 3, kind: input, shape index: {}]
  %s4 = inlined_call_operand.hbm [shape: bf16[128,128], index: 4, kind: input, shape index: {}]
  %s5 = inlined_call_operand.vmem [shape: f32[1,128], index: 5, kind: input, shape index: {}]
  %s6 = inlined_call_operand.vmem [shape: bf16[128,2], index: 6, kind: input, shape index: {}]
  %s7 = inlined_call_operand.vmem [shape: f32[1,2], index: 7, kind: input, shape index: {}]
  %s8 = inlined_call_operand.hbm [shape: f32[4,3], index: 8, kind: output, shape index: {}]
  %s9 = sld [smem:[#allocation0]]
  $region46: #{tpu_custom_call.1} parent=0
    _
  %s11 = ssub.s32 1, %s9
  %s12 = scalar_select 0, %s11, %s9
  $region1: #{tpu_custom_call.1} parent=0
    #allocation2 [shape = 'u8[32768]{0}', space=vmem, size = 0x8000, scoped, tag = 'input window, operand 4, single buffered']
    #allocation3 [shape = 's32[1]{0}', space=sflag, size = 0x4, scoped, tag = 'scoped memory for tpu_custom_call.1']
    #allocation4 [shape = 's32[1]{0}', space=sflag, size = 0x4, scoped, tag = 'scoped memory for tpu_custom_call.1']
    #allocation5 [shape = 'u8[4096]{0}', space=vmem, size = 0x1000, scoped, tag = 'output window, operand 0, single buffered']
    %13 = vsyncpa [#allocation3], 0
    %14 = vsyncpa [#allocation4], 0
    // Predicated region
    $region2: #{tpu_custom_call.1} parent=1 // pred_check
      _
    $region3: #{tpu_custom_call.1} parent=1 // pred_check_branch
      %16 = sbr.rel (0) target = $region5
    $region4: #{tpu_custom_call.1} parent=1 // pred_region
      _
    $region5: #{tpu_custom_call.1} parent=1 // pred_fallthru
      _
    // Predicated region
    $region6: #{tpu_custom_call.1} parent=1 // pred_check
      _
    $region7: #{tpu_custom_call.1} parent=1 // pred_check_branch
      %18 = sbr.rel (0) target = $region9
    $region8: #{tpu_custom_call.1} parent=1 // pred_region
      _
    $region9: #{tpu_custom_call.1} parent=1 // pred_fallthru
      _
    // Predicated region
    $region10: #{tpu_custom_call.1} parent=1 // pred_check
      _
    $region11: #{tpu_custom_call.1} parent=1 // pred_check_branch
      %20 = sbr.rel (0) target = $region13
    $region12: #{tpu_custom_call.1} parent=1 // pred_region
      _
    $region13: #{tpu_custom_call.1} parent=1 // pred_fallthru
      _
    // Predicated region
    $region14: #{tpu_custom_call.1} parent=1 // pred_check
      _
    $region15: #{tpu_custom_call.1} parent=1 // pred_check_branch
      %22 = sbr.rel (0) target = $region17
    $region16: #{tpu_custom_call.1} parent=1 // pred_region
      _
    $region17: #{tpu_custom_call.1} parent=1 // pred_fallthru
      _
    // Predicated region
    $region18: #{tpu_custom_call.1} parent=1 // pred_check
      _
    $region19: #{tpu_custom_call.1} parent=1 // pred_check_branch
      %24 = sbr.rel (0) target = $region21
    $region20: #{tpu_custom_call.1} parent=1 // pred_region
      %26 = vsyncadd [#allocation3], 0
      %s27 = sshll.u32 %s4, 4
      %s28 = int_to_ptr.hbm [resolvable:$true] %s27
      %s29 = sshll.u32 [#allocation2], 4
      %s30 = int_to_ptr.vmem [resolvable:$true] %s29
      %35 = dma.hbm_to_vmem [thread:$0]  %s28, 1024, %s30, [#allocation3], 64, 64, 4
    $region21: #{tpu_custom_call.1} parent=1 // pred_fallthru
      _
    // Predicated region
    $region22: #{tpu_custom_call.1} parent=1 // pred_check
      _
    $region23: #{tpu_custom_call.1} parent=1 // pred_check_branch
      %37 = sbr.rel (0) target = $region25
    $region24: #{tpu_custom_call.1} parent=1 // pred_region
      _
    $region25: #{tpu_custom_call.1} parent=1 // pred_fallthru
      _
    // Predicated region
    $region26: #{tpu_custom_call.1} parent=1 // pred_check
      _
    $region27: #{tpu_custom_call.1} parent=1 // pred_check_branch
      %39 = sbr.rel (0) target = $region29
    $region28: #{tpu_custom_call.1} parent=1 // pred_region
      _
    $region29: #{tpu_custom_call.1} parent=1 // pred_fallthru
      _
    // Predicated region
    $region30: #{tpu_custom_call.1} parent=1 // pred_check
      _
    $region31: #{tpu_custom_call.1} parent=1 // pred_check_branch
      %41 = sbr.rel (0) target = $region33
    $region32: #{tpu_custom_call.1} parent=1 // pred_region
      _
    $region33: #{tpu_custom_call.1} parent=1 // pred_fallthru
      _
    // Predicated region
    $region34: #{tpu_custom_call.1} parent=1 // pred_check
      _
    $region35: #{tpu_custom_call.1} parent=1 // pred_check_branch
      %43 = sbr.rel (0) target = $region37
    $region36: #{tpu_custom_call.1} parent=1 // pred_region
      %45 = dma.done [#allocation3], 1024
    $region37: #{tpu_custom_call.1} parent=1 // pred_fallthru
      _
    %v46 = vld [vmem:[%s0] sm:$0xff]
    %v47 = vpack.c.bf16 %v46, %v46
    %v48 = vld [vmem:[%s2] sm:$0xf]
    %v49 = vld [vmem:[%s2 + $0x4] sm:$0xf]
    %v50 = vld [vmem:[%s2 + $0x8] sm:$0xf]
    %v51 = vld [vmem:[%s2 + $0xc] sm:$0xf]
    %v52 = vld [vmem:[%s2 + $0x10] sm:$0xf]
    %v53 = vld [vmem:[%s2 + $0x14] sm:$0xf]
    %v54 = vld [vmem:[%s2 + $0x18] sm:$0xf]
    %v55 = vld [vmem:[%s2 + $0x1c] sm:$0xf]
    %v56 = vld [vmem:[%s2 + $0x20] sm:$0xf]
    %v57 = vld [vmem:[%s2 + $0x24] sm:$0xf]
    %v58 = vld [vmem:[%s2 + $0x28] sm:$0xf]
    %v59 = vld [vmem:[%s2 + $0x2c] sm:$0xf]
    %v60 = vld [vmem:[%s2 + $0x30] sm:$0xf]
    %v61 = vld [vmem:[%s2 + $0x34] sm:$0xf]
    %v62 = vld [vmem:[%s2 + $0x38] sm:$0xf]
    %v63 = vld [vmem:[%s2 + $0x3c] sm:$0xf]
    %v64 = vld [vmem:[%s3] sm:$0x1]
    %v66 = vperm.slane %v64, 0
    %v84 = vunpack.c.l.b16 %v48
    %v85 = vunpack.c.l.b16 %v49
    %v86 = vunpack.c.l.b16 %v50
    %v87 = vunpack.c.l.b16 %v51
    %v88 = vunpack.c.l.b16 %v52
    %v89 = vunpack.c.l.b16 %v53
    %v90 = vunpack.c.l.b16 %v54
    %v91 = vunpack.c.l.b16 %v55
    %v92 = vunpack.c.l.b16 %v56
    %v93 = vunpack.c.l.b16 %v57
    %v94 = vunpack.c.l.b16 %v58
    %v95 = vunpack.c.l.b16 %v59
    %v96 = vunpack.c.l.b16 %v60
    %v97 = vunpack.c.l.b16 %v61
    %v98 = vunpack.c.l.b16 %v62
    %v99 = vunpack.c.l.b16 %v63
    %v100 = vpack.c.b16 %v85, %v84
    %v101 = vpack.c.b16 %v87, %v86
    %v102 = vpack.c.b16 %v89, %v88
    %v103 = vpack.c.b16 %v91, %v90
    %v104 = vpack.c.b16 %v93, %v92
    %v105 = vpack.c.b16 %v95, %v94
    %v106 = vpack.c.b16 %v97, %v96
    %v107 = vpack.c.b16 %v99, %v98
    %116 = vmatpush.bf16.msra.mxu0 %v107
    %117 = vmatpush.bf16.msra.mxu0 %v106
    %118 = vmatpush.bf16.msra.mxu0 %v105
    %119 = vmatpush.bf16.msra.mxu0 %v104
    %120 = vmatpush.bf16.msra.mxu0 %v103
    %121 = vmatpush.bf16.msra.mxu0 %v102
    %122 = vmatpush.bf16.msra.mxu0 %v101
    %123 = vmatpush.bf16.msra.mxu0 %v100
    %124 = vmatmul.bf16.gmra.mxu0 %v47
    %v125 = vpop.f32.mrf.mxu0
    %v126 = vadd.f32 %v66, %v125
    %v127 = vpop.f32.mrf.mxu0
    %128 = vdwg.mxu0
    %v129 = vmax.f32 %v126, 0.0
    %v130 = vpack.c.bf16 %v129, %v129
    %v131 = vld [vmem:[#allocation2] sm:$0xf]
    %v132 = vld [vmem:[#allocation2 + $0x4] sm:$0xf]
    %v133 = vld [vmem:[#allocation2 + $0x8] sm:$0xf]
    %v134 = vld [vmem:[#allocation2 + $0xc] sm:$0xf]
    %v135 = vld [vmem:[#allocation2 + $0x10] sm:$0xf]
    %v136 = vld [vmem:[#allocation2 + $0x14] sm:$0xf]
    %v137 = vld [vmem:[#allocation2 + $0x18] sm:$0xf]
    %v138 = vld [vmem:[#allocation2 + $0x1c] sm:$0xf]
    %v139 = vld [vmem:[#allocation2 + $0x20] sm:$0xf]
    %v140 = vld [vmem:[#allocation2 + $0x24] sm:$0xf]
    %v141 = vld [vmem:[#allocation2 + $0x28] sm:$0xf]
    %v142 = vld [vmem:[#allocation2 + $0x2c] sm:$0xf]
    %v143 = vld [vmem:[#allocation2 + $0x30] sm:$0xf]
    %v144 = vld [vmem:[#allocation2 + $0x34] sm:$0xf]
    %v145 = vld [vmem:[#allocation2 + $0x38] sm:$0xf]
    %v146 = vld [vmem:[#allocation2 + $0x3c] sm:$0xf]
    %v147 = vld [vmem:[%s5] sm:$0x1]
    %v149 = vperm.slane %v147, 0
    %v167 = vunpack.c.l.b16 %v131
    %v168 = vunpack.c.l.b16 %v132
    %v169 = vunpack.c.l.b16 %v133
    %v170 = vunpack.c.l.b16 %v134
    %v171 = vunpack.c.l.b16 %v135
    %v172 = vunpack.c.l.b16 %v136
    %v173 = vunpack.c.l.b16 %v137
    %v174 = vunpack.c.l.b16 %v138
    %v175 = vunpack.c.l.b16 %v139
    %v176 = vunpack.c.l.b16 %v140
    %v177 = vunpack.c.l.b16 %v141
    %v178 = vunpack.c.l.b16 %v142
    %v179 = vunpack.c.l.b16 %v143
    %v180 = vunpack.c.l.b16 %v144
    %v181 = vunpack.c.l.b16 %v145
    %v182 = vunpack.c.l.b16 %v146
    %v183 = vpack.c.b16 %v168, %v167
    %v184 = vpack.c.b16 %v170, %v169
    %v185 = vpack.c.b16 %v172, %v171
    %v186 = vpack.c.b16 %v174, %v173
    %v187 = vpack.c.b16 %v176, %v175
    %v188 = vpack.c.b16 %v178, %v177
    %v189 = vpack.c.b16 %v180, %v179
    %v190 = vpack.c.b16 %v182, %v181
    %199 = vmatpush.bf16.msra.mxu0 %v190
    %200 = vmatpush.bf16.msra.mxu0 %v189
    %201 = vmatpush.bf16.msra.mxu0 %v188
    %202 = vmatpush.bf16.msra.mxu0 %v187
    %203 = vmatpush.bf16.msra.mxu0 %v186
    %204 = vmatpush.bf16.msra.mxu0 %v185
    %205 = vmatpush.bf16.msra.mxu0 %v184
    %206 = vmatpush.bf16.msra.mxu0 %v183
    %207 = vmatmul.bf16.gmra.mxu0 %v130
    %v208 = vpop.f32.mrf.mxu0
    %v209 = vadd.f32 %v149, %v208
    %v210 = vpop.f32.mrf.mxu0
    %211 = vdwg.mxu0
    %v212 = vmax.f32 %v209, 0.0
    %v213 = vpack.c.bf16 %v212, %v212
    %v214 = vld [vmem:[%s6] sm:$0xf]
    %v215 = vld [vmem:[%s6 + $0x4] sm:$0xf]
    %v216 = vld [vmem:[%s6 + $0x8] sm:$0xf]
    %v217 = vld [vmem:[%s6 + $0xc] sm:$0xf]
    %v218 = vld [vmem:[%s6 + $0x10] sm:$0xf]
    %v219 = vld [vmem:[%s6 + $0x14] sm:$0xf]
    %v220 = vld [vmem:[%s6 + $0x18] sm:$0xf]
    %v221 = vld [vmem:[%s6 + $0x1c] sm:$0xf]
    %v222 = vld [vmem:[%s6 + $0x20] sm:$0xf]
    %v223 = vld [vmem:[%s6 + $0x24] sm:$0xf]
    %v224 = vld [vmem:[%s6 + $0x28] sm:$0xf]
    %v225 = vld [vmem:[%s6 + $0x2c] sm:$0xf]
    %v226 = vld [vmem:[%s6 + $0x30] sm:$0xf]
    %v227 = vld [vmem:[%s6 + $0x34] sm:$0xf]
    %v228 = vld [vmem:[%s6 + $0x38] sm:$0xf]
    %v229 = vld [vmem:[%s6 + $0x3c] sm:$0xf]
    %v230 = vld [vmem:[%s7] sm:$0x1]
    %v232 = vperm.slane %v230, 0
    %v250 = vunpack.c.l.b16 %v214
    %v251 = vunpack.c.l.b16 %v215
    %v252 = vunpack.c.l.b16 %v216
    %v253 = vunpack.c.l.b16 %v217
    %v254 = vunpack.c.l.b16 %v218
    %v255 = vunpack.c.l.b16 %v219
    %v256 = vunpack.c.l.b16 %v220
    %v257 = vunpack.c.l.b16 %v221
    %v258 = vunpack.c.l.b16 %v222
    %v259 = vunpack.c.l.b16 %v223
    %v260 = vunpack.c.l.b16 %v224
    %v261 = vunpack.c.l.b16 %v225
    %v262 = vunpack.c.l.b16 %v226
    %v263 = vunpack.c.l.b16 %v227
    %v264 = vunpack.c.l.b16 %v228
    %v265 = vunpack.c.l.b16 %v229
    %v266 = vpack.c.b16 %v251, %v250
    %v267 = vpack.c.b16 %v253, %v252
    %v268 = vpack.c.b16 %v255, %v254
    %v269 = vpack.c.b16 %v257, %v256
    %v270 = vpack.c.b16 %v259, %v258
    %v271 = vpack.c.b16 %v261, %v260
    %v272 = vpack.c.b16 %v263, %v262
    %v273 = vpack.c.b16 %v265, %v264
    %282 = vmatpush.bf16.msra.mxu0 %v273
    %283 = vmatpush.bf16.msra.mxu0 %v272
    %284 = vmatpush.bf16.msra.mxu0 %v271
    %285 = vmatpush.bf16.msra.mxu0 %v270
    %286 = vmatpush.bf16.msra.mxu0 %v269
    %287 = vmatpush.bf16.msra.mxu0 %v268
    %288 = vmatpush.bf16.msra.mxu0 %v267
    %289 = vmatpush.bf16.msra.mxu0 %v266
    %290 = vmatmul.bf16.gmra.mxu0 %v213
    %v291 = vpop.f32.mrf.mxu0
    %v292 = vadd.f32 %v232, %v291
    %v293 = vpop.f32.mrf.mxu0
    %294 = vdwg.mxu0
    %vm295 = vcmask 15360
    %v296 = vsel %vm295, %v292, -inf
    %297 = vmax.xlane.f32.xlu0 %v296
    %v298 = vpop.xlane.xlu0 %297
    %v299 = vsub.f32 %v292, %v298
    %v300 = vmul.f32 %v299, 1.442695
    %v301 = vpow.pop %v300
    %v302 = vsel %vm295, %v301, 0.0
    %303 = vadd.xlane.f32.xlu0 %v302
    %v304 = vpop.xlane.xlu0 %303
    %v305 = vrcp.pop %v304
    %v306 = vmul.f32 %v304, %v305
    %v307 = vsub.f32 1.0, %v306
    %v308 = vmul.f32 %v305, %v307
    %v309 = vadd.f32 %v305, %v308
    %vm310 = vweird.f32 %v304
    %vm311 = vweird.f32 %v305
    %vm312 = vmor %vm310, %vm311
    %v313 = vsel %vm312, %v305, %v309
    %v314 = vand.u32 2147483647, %v304
    %vm315 = vcmp.eq.f32.partialorder %v314, 8.507059e+37
    %v316 = vand.u32 %v304, 2147483648
    %v317 = vor.u32 1.1754944e-38, %v316
    %v318 = vsel %vm315, %v317, %v313
    %v319 = vmul.f32 %v301, %v318
    %v320 = vld [vmem:[%s1] sm:$0xff]
    %v321 = vadd.f32 %v319, 0.0
    %vm322 = vcmp.ge.f32.partialorder %v320, %v321
    %v323 = vsel %vm322, 1, 0
    %v324 = vcvt.s32.f32 %v323
    %v325 = vadd.f32 %v324, 0.0
    %327 = vrot.lane.b32.xlu0 %v325, 2
    %v328 = vpop.permute.xlu0 %327
    %v330 = vsel %vm295, %v319, %v328
    %vm331 = vcmask 23552
    %332 = vst.msk [vmem:[#allocation5] sm:$0xff] %vm331, %v330
    // Predicated region
    $region38: #{tpu_custom_call.1} parent=1 // pred_check
      _
    $region39: #{tpu_custom_call.1} parent=1 // pred_check_branch
      %334 = sbr.rel (0) target = $region41
    $region40: #{tpu_custom_call.1} parent=1 // pred_region
      %336 = vsyncadd [#allocation4], 64
      %s337 = sshll.u32 [#allocation5], 4
      %s338 = int_to_ptr.vmem [resolvable:$true] %s337
      %s339 = sshll.u32 %s8, 4
      %s340 = int_to_ptr.hbm [resolvable:$true] %s339
      %345 = dma.vmem_to_hbm [thread:$0]  %s338, 64, %s340, [#allocation4], 64, 64, 4
    $region41: #{tpu_custom_call.1} parent=1 // pred_fallthru
      _
    // Predicated region
    $region42: #{tpu_custom_call.1} parent=1 // pred_check
      _
    $region43: #{tpu_custom_call.1} parent=1 // pred_check_branch
      %347 = sbr.rel (0) target = $region45
    $region44: #{tpu_custom_call.1} parent=1 // pred_region
      %349 = dma.done [#allocation4], 128
    $region45: #{tpu_custom_call.1} parent=1 // pred_fallthru
      _
    %350 = vsyncpa [#allocation3], 1
    %351 = vsyncpa [#allocation4], 1

</llo_original>
